<compile_context>
chip_gen: v7x
topology: tpu7x:2x2x1
jax: 0.10.0
libtpu: 0.0.40
codegen_flags: <defaults>
</compile_context>

<pallas_src>
import functools

import jax
import jax.numpy as jnp
from jax.experimental import pallas as pl
from jax.experimental.pallas import tpu as pltpu


# ------------------------- Pallas kernel ------------------------- #


def _fused_forward_kernel(n_pix, steps_per_core, needs_mask,
                          p_ref, wc_ref, sh_ref, wm_ref, bm_ref, o_ref, acc_ref):
    """Fused init_conv (+ folded BN + ReLU) + synthetic backbone + global average pool.

    p_ref  : (TILE, 256)   bf16 im2col patches for this tile of conv-output pixels
    wc_ref : (256, 128)    bf16 conv weight, BN scale folded, K/cout zero-padded (resident)
    sh_ref : (1, 128)      f32 folded BN shift (bias), zero-padded
    wm_ref : (128, 1024)   bf16 synthetic-backbone channel-mix weight (resident)
    bm_ref : (1, 1024)     f32 synthetic-backbone bias
    o_ref  : (1, 8, 1024)  f32 per-core partial of the global average pool (row 0 used)
    acc_ref: (1, 1024)     f32 VMEM scratch accumulator
    """
    core = pl.program_id(0)
    step = pl.program_id(1)

    @pl.when(step == 0)
    def _():
        acc_ref[...] = jnp.zeros_like(acc_ref)

    # ---- init_conv: 7x7 / stride-2 conv as an im2col MXU matmul (bf16 -> f32 acc) ----
    conv = jnp.dot(p_ref[...], wc_ref[...], preferred_element_type=jnp.float32)
    conv = jnp.maximum(conv + sh_ref[...], 0.0)                      # (TILE, 128) f32

    # ---- synthetic GoogLeNet backbone: 1x1 channel mix -> ReLU ----
    # TODO(synk): stands in for the pretrained Inception stack (children[1:-2]).
    feat = jnp.dot(conv.astype(wm_ref.dtype), wm_ref[...],
                   preferred_element_type=jnp.float32)
    feat = jnp.maximum(feat + bm_ref[...], 0.0)                      # (TILE, 1024) f32

    if needs_mask:
        # Zero out padded pixel rows (they carry relu(bias) garbage otherwise).
        tile = feat.shape[0]
        base = (core * steps_per_core + step) * tile
        rows = base + jax.lax.broadcasted_iota(jnp.int32, (tile, 1), 0)
        feat = jnp.where(rows < n_pix, feat, 0.0)

    # ---- global average pool: running sum over pixel tiles ----
    acc_ref[...] += jnp.sum(feat, axis=0, keepdims=True)

    @pl.when(step == pl.num_programs(1) - 1)
    def _():
        # Per-core partial mean; the wrapper sums the two partials.
        o_ref[...] = jnp.broadcast_to(acc_ref[...] * (1.0 / n_pix),
                                      o_ref.shape).astype(o_ref.dtype)


# ------------------------- wrappers ------------------------- #


def _round_up(x, m):
    return ((x + m - 1) // m) * m


def _im2col_7x7_s2_p3(img):
    """img: (C, H, W) -> (Ho*Wo, C*49) patch matrix of a 7x7 / stride-2 / pad-3 conv.

    Column ordering is c*49 + (kh*7 + kw), matching the weight reshape below.
    """
    C, H, W = img.shape
    Ho = (H + 6 - 7) // 2 + 1
    Wo = (W + 6 - 7) // 2 + 1
    xp = jnp.pad(img, ((0, 0), (3, 3), (3, 3)))
    taps = []
    for kh in range(7):
        for kw in range(7):
            taps.append(
                jax.lax.slice(
                    xp,
                    (0, kh, kw),
                    (C, kh + 2 * (Ho - 1) + 1, kw + 2 * (Wo - 1) + 1),
                    (1, 2, 2),
                )
            )  # (C, Ho, Wo)
    patches = jnp.stack(taps, axis=0)                         # (49, C, Ho, Wo)
    patches = patches.transpose(2, 3, 1, 0).reshape(Ho * Wo, C * 49)
    return patches


def _plan_tiles(n_pix, tile_cap, n_cores):
    """Pixel tiling: cdiv-based (no full-extent fallback), tile is a multiple of 16."""
    per_core = -(-n_pix // n_cores)
    tile_cap = max(16, _round_up(tile_cap, 16))
    steps = max(1, -(-per_core // tile_cap))
    tile = _round_up(-(-per_core // steps), 16)
    padded = n_cores * steps * tile
    return tile, steps, padded


def saliency_baseline_googlenet_forward(x, params, *, pixel_tile=2048, n_cores=2):
    """x: (N, 4, H, W); only x[0] is used (as in the PyTorch forward). Returns (1024,)."""
    w_conv, bn_scale, bn_shift, w_mix, b_mix = params
    img = x[0].astype(jnp.float32)                     # (4, H, W)
    C = img.shape[0]
    cout = w_conv.shape[0]                             # 64
    nfeat = w_mix.shape[1]                             # 1024

    patches = _im2col_7x7_s2_p3(img)                   # (n_pix, C*49) f32
    n_pix, kdim = patches.shape

    tile, steps, padded = _plan_tiles(n_pix, pixel_tile, n_cores)
    needs_mask = padded != n_pix

    kpad = _round_up(kdim, 128)                        # 196 -> 256: full-depth contraction
    cpad = _round_up(cout, 128)                        # 64  -> 128: full lanes / full-depth K

    # Conv weight (cout, C, 7, 7) -> im2col layout (C*49, cout), BN scale folded in.
    wc = jnp.transpose(w_conv, (1, 2, 3, 0)).reshape(kdim, cout) * bn_scale
    wc_p = jnp.zeros((kpad, cpad), jnp.float32).at[:kdim, :cout].set(wc).astype(jnp.bfloat16)
    sh_p = jnp.zeros((1, cpad), jnp.float32).at[:, :cout].set(bn_shift)
    wm_p = jnp.zeros((cpad, nfeat), jnp.float32).at[:cout, :].set(w_mix).astype(jnp.bfloat16)

    # Patches padded to the tiled extent, built directly in bf16 (halves HBM traffic).
    patches_p = jnp.zeros((padded, kpad), jnp.bfloat16).at[:n_pix, :kdim].set(
        patches.astype(jnp.bfloat16))

    patch_spec_kwargs = {}
    if steps >= 4:
        # Cheap insurance against exposed patch DMA once bf16 tiles shrink per-step compute.
        patch_spec_kwargs["pipeline_mode"] = pl.Buffered(3)

    kernel = functools.partial(_fused_forward_kernel, int(n_pix), steps, needs_mask)

    partials = pl.pallas_call(
        kernel,
        out_shape=jax.ShapeDtypeStruct((n_cores, 8, nfeat), jnp.float32),
        grid_spec=pltpu.PrefetchScalarGridSpec(
            num_scalar_prefetch=0,
            grid=(n_cores, steps),
            in_specs=[
                pl.BlockSpec((tile, kpad), lambda c, i: (c * steps + i, 0),
                             **patch_spec_kwargs),                  # pixel-tiled patches
                pl.BlockSpec((kpad, cpad), lambda c, i: (0, 0)),    # conv weight (resident)
                pl.BlockSpec((1, cpad), lambda c, i: (0, 0)),       # folded BN shift
                pl.BlockSpec((cpad, nfeat), lambda c, i: (0, 0)),   # backbone weight (resident)
                pl.BlockSpec((1, nfeat), lambda c, i: (0, 0)),      # backbone bias
            ],
            out_specs=pl.BlockSpec((1, 8, nfeat), lambda c, i: (c, 0, 0)),
            scratch_shapes=[pltpu.VMEM((1, nfeat), jnp.float32)],
        ),
        compiler_params=pltpu.CompilerParams(
            # Leading axis shards across v7x's two TensorCores; pixel axis is the reduction.
            dimension_semantics=("parallel", "arbitrary"),
        ),
    )(patches_p, wc_p, sh_p, wm_p, b_mix)

    # Each core already applied 1/n_pix; summing the partials gives the global mean.
    return partials[:, 0, :].sum(axis=0)               # (1024,) == torch.squeeze(...)


def saliency_baseline_googlenet_reference(x, params):
    """Pure-JAX mimic of the kernel numerics (bf16 matmul operands, f32 accumulation)."""
    w_conv, bn_scale, bn_shift, w_mix, b_mix = params
    img = x[0].astype(jnp.float32)
    C = img.shape[0]
    patches = _im2col_7x7_s2_p3(img)
    wc = jnp.transpose(w_conv, (1, 2, 3, 0)).reshape(C * 49, -1) * bn_scale
    conv = jnp.dot(patches.astype(jnp.bfloat16), wc.astype(jnp.bfloat16),
                   preferred_element_type=jnp.float32)
    conv = jnp.maximum(conv + bn_shift, 0.0)
    feat = jnp.dot(conv.astype(jnp.bfloat16), w_mix.astype(jnp.bfloat16),
                   preferred_element_type=jnp.float32)
    feat = jnp.maximum(feat + b_mix, 0.0)
    return jnp.mean(feat, axis=0)


def init_params(key, in_channels=4, conv_channels=64, num_backbone_features=1024):
    k_conv, k_mix = jax.random.split(key, 2)

    def kaiming(k, fan_in, shape):
        return (jnp.sqrt(2.0 / fan_in) * jax.random.normal(k, shape)).astype(jnp.float32)

    # init_conv: Conv2d(4, 64, kernel_size=7, stride=2, padding=3, bias=False)
    w_conv = kaiming(k_conv, in_channels * 7 * 7, (conv_channels, in_channels, 7, 7))

    # BatchNorm2d(64, eps=1e-3), inference mode, folded into per-channel scale/shift.
    # TODO(synk): training-mode (batch-statistics) BN is not implemented.
    gamma = jnp.ones((conv_channels,), jnp.float32)
    beta = jnp.zeros((conv_channels,), jnp.float32)
    running_mean = jnp.zeros((conv_channels,), jnp.float32)
    running_var = jnp.ones((conv_channels,), jnp.float32)
    eps = 1e-3
    scale = gamma / jnp.sqrt(running_var + eps)
    shift = beta - running_mean * scale
    bn_scale = scale.reshape(1, conv_channels)
    bn_shift = shift.reshape(1, conv_channels)

    # Synthetic stand-in for the pretrained GoogLeNet backbone (64 -> 1024 channel mix).
    w_mix = kaiming(k_mix, conv_channels, (conv_channels, num_backbone_features))
    b_mix = jnp.zeros((1, num_backbone_features), jnp.float32)

    return (w_conv, bn_scale, bn_shift, w_mix, b_mix)


if __name__ == "__main__":
    key = jax.random.PRNGKey(0)
    k_params, k_x = jax.random.split(key)

    # x[0] is the single (4, 18, 18) image the forward consumes: 9x9 = 81 conv-output
    # pixels, so with pixel_tile=16 the test exercises the multi-step reduction, both
    # per-core partial-sum blocks, and the padded-row mask path.
    N, C, H, W = 2, 4, 18, 18
    x = jax.random.normal(k_x, (N, C, H, W), dtype=jnp.float32)

    params = init_params(k_params)

    feats = saliency_baseline_googlenet_forward(x, params, pixel_tile=16)
    jax.block_until_ready(feats)

    assert feats.shape == (1024,), feats.shape
    assert feats.dtype == jnp.float32

    ref = saliency_baseline_googlenet_reference(x, params)
    assert jnp.allclose(feats, ref, rtol=1e-3, atol=1e-3), float(jnp.max(jnp.abs(feats - ref)))

    print("KERNEL_OK")
</pallas_src>

<mosaic_0001>
module attributes {stable_mosaic.version = 11 : i64} {
  func.func @_fused_forward_kernel(%arg0: i32, %arg1: i32, %arg2: memref<16x256xbf16, #tpu.memory_space<vmem>>, %arg3: memref<256x128xbf16, #tpu.memory_space<vmem>>, %arg4: memref<1x128xf32, #tpu.memory_space<vmem>>, %arg5: memref<128x1024xbf16, #tpu.memory_space<vmem>>, %arg6: memref<1x1024xf32, #tpu.memory_space<vmem>>, %arg7: memref<1x8x1024xf32, #tpu.memory_space<vmem>>, %arg8: memref<1x1024xf32, #tpu.memory_space<vmem>>) attributes {dimension_semantics = [#tpu.dimension_semantics<parallel>, #tpu.dimension_semantics<arbitrary>], iteration_bounds = array<i64: 2, 3>, scalar_prefetch = 0 : i64, scratch_operands = 1 : i64, tpu.core_type = #tpu.core_type<tc>, window_params = [{transform_indices = @transform_0, window_bounds = array<i64: 16, 256>}, {pipeline_mode = #tpu.pipeline_mode<synchronous>, transform_indices = @transform_1, window_bounds = array<i64: 256, 128>}, {pipeline_mode = #tpu.pipeline_mode<synchronous>, transform_indices = @transform_2, window_bounds = array<i64: 1, 128>}, {pipeline_mode = #tpu.pipeline_mode<synchronous>, transform_indices = @transform_3, window_bounds = array<i64: 128, 1024>}, {pipeline_mode = #tpu.pipeline_mode<synchronous>, transform_indices = @transform_4, window_bounds = array<i64: 1, 1024>}, {transform_indices = @transform_5, window_bounds = array<i64: 1, 8, 1024>}]} {
    %c0_i32 = arith.constant 0 : i32
    %0 = arith.cmpi eq, %arg1, %c0_i32 : i32
    %1 = arith.extui %0 : i1 to i32
    %c0_i32_0 = arith.constant 0 : i32
    %2 = arith.cmpi ne, %1, %c0_i32_0 : i32
    scf.if %2 {
      %cst_20 = arith.constant 0.000000e+00 : f32
      %39 = vector.broadcast %cst_20 : f32 to vector<1x1024xf32>
      %c0_21 = arith.constant 0 : index
      %c0_22 = arith.constant 0 : index
      %40 = vector.load %arg8[%c0_21, %c0_22] : memref<1x1024xf32, #tpu.memory_space<vmem>>, vector<1x1024xf32>
      tpu.vector_store %arg8[%c0_21, %c0_22], %39 {strides = array<i32>} : memref<1x1024xf32, #tpu.memory_space<vmem>>, vector<1x1024xf32>,
    } else {
    }
    %c0 = arith.constant 0 : index
    %c0_1 = arith.constant 0 : index
    %3 = vector.load %arg2[%c0, %c0_1] : memref<16x256xbf16, #tpu.memory_space<vmem>>, vector<16x256xbf16>
    %c0_2 = arith.constant 0 : index
    %c0_3 = arith.constant 0 : index
    %4 = vector.load %arg3[%c0_2, %c0_3] : memref<256x128xbf16, #tpu.memory_space<vmem>>, vector<256x128xbf16>
    %cst = arith.constant dense<0.000000e+00> : vector<16x128xf32>
    %5 = tpu.matmul %3, %4, %cst {dimension_numbers = #tpu.dot_dimension_numbers<[1], [0], [0], [1], [0, 0, 1, 1], [], []>} : vector<16x256xbf16>, vector<256x128xbf16>, vector<16x128xf32> -> vector<16x128xf32>
    %c0_4 = arith.constant 0 : index
    %c0_5 = arith.constant 0 : index
    %6 = vector.load %arg4[%c0_4, %c0_5] : memref<1x128xf32, #tpu.memory_space<vmem>>, vector<1x128xf32>
    %7 = vector.broadcast %6 : vector<1x128xf32> to vector<16x128xf32>
    %8 = arith.addf %5, %7 : vector<16x128xf32>
    %cst_6 = arith.constant 0.000000e+00 : f32
    %9 = vector.broadcast %cst_6 : f32 to vector<16x128xf32>
    %10 = arith.maximumf %8, %9 : vector<16x128xf32>
    %11 = arith.truncf %10 : vector<16x128xf32> to vector<16x128xbf16>
    %c0_7 = arith.constant 0 : index
    %c0_8 = arith.constant 0 : index
    %12 = vector.load %arg5[%c0_7, %c0_8] : memref<128x1024xbf16, #tpu.memory_space<vmem>>, vector<128x1024xbf16>
    %cst_9 = arith.constant dense<0.000000e+00> : vector<16x1024xf32>
    %13 = tpu.matmul %11, %12, %cst_9 {dimension_numbers = #tpu.dot_dimension_numbers<[1], [0], [0], [1], [0, 0, 1, 1], [], []>} : vector<16x128xbf16>, vector<128x1024xbf16>, vector<16x1024xf32> -> vector<16x1024xf32>
    %c0_10 = arith.constant 0 : index
    %c0_11 = arith.constant 0 : index
    %14 = vector.load %arg6[%c0_10, %c0_11] : memref<1x1024xf32, #tpu.memory_space<vmem>>, vector<1x1024xf32>
    %15 = vector.broadcast %14 : vector<1x1024xf32> to vector<16x1024xf32>
    %16 = arith.addf %13, %15 : vector<16x1024xf32>
    %cst_12 = arith.constant 0.000000e+00 : f32
    %17 = vector.broadcast %cst_12 : f32 to vector<16x1024xf32>
    %18 = arith.maximumf %16, %17 : vector<16x1024xf32>
    %c3_i32 = arith.constant 3 : i32
    %19 = arith.muli %arg0, %c3_i32 : i32
    %20 = arith.addi %19, %arg1 : i32
    %c16_i32 = arith.constant 16 : i32
    %21 = arith.muli %20, %c16_i32 : i32
    %22 = tpu.iota {dimensions = array<i32: 0>} : vector<16x1xi32>
    %23 = vector.broadcast %21 : i32 to vector<16x1xi32>
    %24 = arith.addi %23, %22 : vector<16x1xi32>
    %c81_i32 = arith.constant 81 : i32
    %25 = vector.broadcast %c81_i32 : i32 to vector<16x1xi32>
    %26 = arith.cmpi slt, %24, %25 : vector<16x1xi32>
    %cst_13 = arith.constant 0.000000e+00 : f32
    %27 = vector.shape_cast %26 : vector<16x1xi1> to vector<16x1xi1>
    %28 = vector.broadcast %27 : vector<16x1xi1> to vector<16x1024xi1>
    %29 = vector.broadcast %cst_13 : f32 to vector<16x1024xf32>
    %30 = arith.select %28, %18, %29 : vector<16x1024xi1>, vector<16x1024xf32>
    %c0_14 = arith.constant 0 : index
    %c0_15 = arith.constant 0 : index
    %31 = vector.load %arg8[%c0_14, %c0_15] : memref<1x1024xf32, #tpu.memory_space<vmem>>, vector<1x1024xf32>
    %cst_16 = arith.constant dense<0.000000e+00> : vector<1024xf32>
    %32 = vector.multi_reduction <add>, %30, %cst_16 [0] : vector<16x1024xf32> to vector<1024xf32>
    %33 = vector.shape_cast %32 : vector<1024xf32> to vector<1x1024xf32>
    %34 = arith.addf %31, %33 : vector<1x1024xf32>
    %c0_17 = arith.constant 0 : index
    %c0_18 = arith.constant 0 : index
    %35 = vector.load %arg8[%c0_17, %c0_18] : memref<1x1024xf32, #tpu.memory_space<vmem>>, vector<1x1024xf32>
    tpu.vector_store %arg8[%c0_17, %c0_18], %34 {strides = array<i32>} : memref<1x1024xf32, #tpu.memory_space<vmem>>, vector<1x1024xf32>,
    %c2_i32 = arith.constant 2 : i32
    %36 = arith.cmpi eq, %arg1, %c2_i32 : i32
    %37 = arith.extui %36 : i1 to i32
    %c0_i32_19 = arith.constant 0 : i32
    %38 = arith.cmpi ne, %37, %c0_i32_19 : i32
    scf.if %38 {
      %c0_20 = arith.constant 0 : index
      %c0_21 = arith.constant 0 : index
      %39 = vector.load %arg8[%c0_20, %c0_21] : memref<1x1024xf32, #tpu.memory_space<vmem>>, vector<1x1024xf32>
      %cst_22 = arith.constant 0.0123456791 : f32
      %40 = vector.broadcast %cst_22 : f32 to vector<1x1024xf32>
      %41 = arith.mulf %39, %40 : vector<1x1024xf32>
      %42 = vector.shape_cast %41 : vector<1x1024xf32> to vector<1x1x1024xf32>
      %43 = vector.broadcast %42 : vector<1x1x1024xf32> to vector<1x8x1024xf32>
      %c0_23 = arith.constant 0 : index
      %c0_24 = arith.constant 0 : index
      %c0_25 = arith.constant 0 : index
      %44 = vector.load %arg7[%c0_23, %c0_24, %c0_25] : memref<1x8x1024xf32, #tpu.memory_space<vmem>>, vector<1x8x1024xf32>
      tpu.vector_store %arg7[%c0_23, %c0_24, %c0_25], %43 {strides = array<i32>} : memref<1x8x1024xf32, #tpu.memory_space<vmem>>, vector<1x8x1024xf32>,
    } else {
    }
    return
  }
  func.func @transform_0(%arg0: i32, %arg1: i32) -> (i32, i32) {
    %c3_i32 = arith.constant 3 : i32
    %0 = arith.muli %arg0, %c3_i32 : i32
    %1 = arith.addi %0, %arg1 : i32
    %c0_i32 = arith.constant 0 : i32
    %c0_i32_0 = arith.constant 0 : i32
    return %1, %c0_i32 : i32, i32
  }
  func.func @transform_1(%arg0: i32, %arg1: i32) -> (i32, i32) {
    %c0_i32 = arith.constant 0 : i32
    %c0_i32_0 = arith.constant 0 : i32
    %c0_i32_1 = arith.constant 0 : i32
    return %c0_i32, %c0_i32_0 : i32, i32
  }
  func.func @transform_2(%arg0: i32, %arg1: i32) -> (i32, i32) {
    %c0_i32 = arith.constant 0 : i32
    %c0_i32_0 = arith.constant 0 : i32
    %c0_i32_1 = arith.constant 0 : i32
    return %c0_i32, %c0_i32_0 : i32, i32
  }
  func.func @transform_3(%arg0: i32, %arg1: i32) -> (i32, i32) {
    %c0_i32 = arith.constant 0 : i32
    %c0_i32_0 = arith.constant 0 : i32
    %c0_i32_1 = arith.constant 0 : i32
    return %c0_i32, %c0_i32_0 : i32, i32
  }
  func.func @transform_4(%arg0: i32, %arg1: i32) -> (i32, i32) {
    %c0_i32 = arith.constant 0 : i32
    %c0_i32_0 = arith.constant 0 : i32
    %c0_i32_1 = arith.constant 0 : i32
    return %c0_i32, %c0_i32_0 : i32, i32
  }
  func.func @transform_5(%arg0: i32, %arg1: i32) -> (i32, i32, i32) {
    %c0_i32 = arith.constant 0 : i32
    %c0_i32_0 = arith.constant 0 : i32
    %c0_i32_1 = arith.constant 0 : i32
    return %arg0, %c0_i32, %c0_i32_0 : i32, i32, i32
  }
}

</mosaic_0001>

<llo_original>
// kernel: tpu_custom_call.1
$region0: #{tpu_custom_call.1}
  #allocation0 [shape = 'u32[]', space=smem, size = 0x4, offset = 0x4, fixed_abs, tag = 'smem constant byte address 0x4 - core index']
  #allocation1 [shape = 'u32[144,128]{1,0:T(1,128)}', space=vmem, size = 0x12000, scoped, tag = 'internal scratch']
  #allocation2 [shape = 'f32[1,1024]{1,0:T(1,128)}', space=vmem, size = 0x1000, scoped, tag = 'scratch operand']
  %s0 = inlined_call_operand.hbm [shape: bf16[96,256], index: 0, kind: input, shape index: {}]
  %s1 = inlined_call_operand.hbm [shape: bf16[256,128], index: 1, kind: input, shape index: {}]
  %s2 = inlined_call_operand.vmem [shape: f32[1,128], index: 2, kind: input, shape index: {}]
  %s3 = inlined_call_operand.hbm [shape: bf16[128,1024], index: 3, kind: input, shape index: {}]
  %s4 = inlined_call_operand.vmem [shape: f32[1,1024], index: 4, kind: input, shape index: {}]
  %s5 = inlined_call_operand.hbm [shape: f32[2,8,1024], index: 5, kind: output, shape index: {}]
  %s6 = sld [smem:[#allocation0]]
  $region73: #{tpu_custom_call.1} parent=0
    _
  %s8 = ssub.s32 1, %s6
  %s9 = scalar_select 0, %s8, %s6
  $region1: #{tpu_custom_call.1} parent=0
    #allocation3 [shape = 'u8[16384]{0}', space=vmem, size = 0x4000, scoped, tag = 'input window, operand 0']
    #allocation4 [shape = 's32[2]{0}', space=sflag, size = 0x8, scoped, tag = 'scoped memory for tpu_custom_call.1']
    #allocation5 [shape = 's32[2]{0}', space=sflag, size = 0x8, scoped, tag = 'scoped memory for tpu_custom_call.1']
    #allocation6 [shape = 'u8[65536]{0}', space=vmem, size = 0x10000, scoped, tag = 'input window, operand 1, single buffered']
    #allocation7 [shape = 's32[1]{0}', space=sflag, size = 0x4, scoped, tag = 'scoped memory for tpu_custom_call.1']
    #allocation8 [shape = 'u8[262144]{0}', space=vmem, size = 0x40000, scoped, tag = 'input window, operand 3, single buffered']
    #allocation9 [shape = 'u8[65536]{0}', space=vmem, size = 0x10000, scoped, tag = 'output window, operand 0']
    %10 = vsyncpa [#allocation4], 0
    %s11 = scalar_lea.sflag [#allocation4], 1
    %12 = vsyncpa %s11, 0
    %13 = vsyncpa [#allocation7], 0
    %14 = vsyncpa [#allocation5], 0
    %s15 = scalar_lea.sflag [#allocation5], 1
    %16 = vsyncpa %s15, 0
    loop: start=0, step=1, limit=8
    $region2: #{tpu_custom_call.1} parent=1 // loop_pre_header
      _
    $region3: #{tpu_custom_call.1} parent=1 // loop_header
      %s18 = sphi 0, %s22
      %p19 = scmp.ge.s32.totalorder %s18, 8
      %s25 = sphi 0, %s37
      %s26 = sphi 0, %s33
      %s27 = sphi 0, %s25
      %s28 = sphi 0, %s26
      %s29 = sphi 0, %s27
      %s30 = sphi 0, %s28
      %s44 = sphi 0, %s46
      %s47 = sphi 0, %s44
      %s48 = sphi 0, %s47
      %s64 = sphi 0, %s48
      %s68 = sphi 0, %s68
      %s70 = sphi 0, %s68
      %s71 = sphi 0, %s70
      %s85 = sphi 0, %s71
      %s89 = sphi 0, %s89
      %s91 = sphi 0, %s89
      %s92 = sphi 0, %s91
      %s106 = sphi 0, %s92
      %s110 = sphi 0, %s110
      %s112 = sphi 0, %s110
      %s113 = sphi 0, %s112
      %s127 = sphi 0, %s113
      %s131 = sphi 0, %s131
      %s133 = sphi 0, %s131
      %s134 = sphi 0, %s133
      %s148 = sphi 0, %s134
      %s154 = sphi 0, %s156
      %s157 = sphi 0, %s154
      %s158 = sphi 0, %s157
      %s174 = sphi 0, %s158
    $region4: #{tpu_custom_call.1} parent=1 // loop_header_branch
      %21 = sbr.rel (%p19) target = $region8
    $region5: #{tpu_custom_call.1} parent=1 // loop_body
      %s23 = ssub.s32 %s18, 1
      %s24 = ssub.s32 %s18, 2
      %s31 = sadd.s32 1, %s26
      %p32 = scmp.ge.s32.totalorder %s31, 3
      %s33 = scalar_select %p32, 0, %s31
      %s34 = sadd.s32 1, %s25
      %s35 = scalar_select %p32, %s34, %s25
      %p36 = scmp.ge.s32.totalorder %s35, 2
      %s37 = scalar_select %p36, 0, %s35
      %s38 = smul.u32 %s25, 3
      %s39 = sadd.s32 %s38, %s26
      %s40 = smul.u32 %s37, 3
      %s41 = sadd.s32 %s40, %s33
      %s42 = ssub.s32 %s39, %s41
      %p43 = scmp.eq.s32.totalorder %s42, 0
      %s45 = sadd.s32 %s44, 1
      %s46 = scalar_select %p43, %s44, %s45
      %p49 = pneg %p43
      %p50 = scmp.eq.s32.totalorder %s18, 5
      %p51 = por %p49, %p50
      %p52 = scmp.ne.s32.totalorder %s44, %s47
      %p53 = scmp.eq.s32.totalorder %s18, 0
      %p54 = por %p52, %p53
      %p55 = scmp.ne.s32.totalorder %s44, %s47
      %p56 = scmp.eq.s32.totalorder %s23, 5
      %p57 = por %p55, %p56
      %p58 = scmp.ne.s32.totalorder %s47, %s48
      %p59 = scmp.eq.s32.totalorder %s23, 0
      %p60 = por %p58, %p59
      %p61 = scmp.ne.s32.totalorder %s47, %s48
      %p62 = scmp.eq.s32.totalorder %s24, 5
      %p63 = por %p61, %p62
      %p65 = scmp.ne.s32.totalorder %s48, %s64
      %p66 = scmp.eq.s32.totalorder %s24, 0
      %p67 = por %p65, %p66
      %s69 = sadd.s32 %s68, 1
      %p72 = scmp.eq.s32.totalorder %s18, 5
      %p73 = scmp.ne.s32.totalorder %s68, %s70
      %p74 = scmp.eq.s32.totalorder %s18, 0
      %p75 = por %p73, %p74
      %p76 = scmp.ne.s32.totalorder %s68, %s70
      %p77 = scmp.eq.s32.totalorder %s23, 5
      %p78 = por %p76, %p77
      %p79 = scmp.ne.s32.totalorder %s70, %s71
      %p80 = scmp.eq.s32.totalorder %s23, 0
      %p81 = por %p79, %p80
      %p82 = scmp.ne.s32.totalorder %s70, %s71
      %p83 = scmp.eq.s32.totalorder %s24, 5
      %p84 = por %p82, %p83
      %p86 = scmp.ne.s32.totalorder %s71, %s85
      %p87 = scmp.eq.s32.totalorder %s24, 0
      %p88 = por %p86, %p87
      %s90 = sadd.s32 %s89, 1
      %p93 = scmp.eq.s32.totalorder %s18, 5
      %p94 = scmp.ne.s32.totalorder %s89, %s91
      %p95 = scmp.eq.s32.totalorder %s18, 0
      %p96 = por %p94, %p95
      %p97 = scmp.ne.s32.totalorder %s89, %s91
      %p98 = scmp.eq.s32.totalorder %s23, 5
      %p99 = por %p97, %p98
      %p100 = scmp.ne.s32.totalorder %s91, %s92
      %p101 = scmp.eq.s32.totalorder %s23, 0
      %p102 = por %p100, %p101
      %p103 = scmp.ne.s32.totalorder %s91, %s92
      %p104 = scmp.eq.s32.totalorder %s24, 5
      %p105 = por %p103, %p104
      %p107 = scmp.ne.s32.totalorder %s92, %s106
      %p108 = scmp.eq.s32.totalorder %s24, 0
      %p109 = por %p107, %p108
      %s111 = sadd.s32 %s110, 1
      %p114 = scmp.eq.s32.totalorder %s18, 5
      %p115 = scmp.ne.s32.totalorder %s110, %s112
      %p116 = scmp.eq.s32.totalorder %s18, 0
      %p117 = por %p115, %p116
      %p118 = scmp.ne.s32.totalorder %s110, %s112
      %p119 = scmp.eq.s32.totalorder %s23, 5
      %p120 = por %p118, %p119
      %p121 = scmp.ne.s32.totalorder %s112, %s113
      %p122 = scmp.eq.s32.totalorder %s23, 0
      %p123 = por %p121, %p122
      %p124 = scmp.ne.s32.totalorder %s112, %s113
      %p125 = scmp.eq.s32.totalorder %s24, 5
      %p126 = por %p124, %p125
      %p128 = scmp.ne.s32.totalorder %s113, %s127
      %p129 = scmp.eq.s32.totalorder %s24, 0
      %p130 = por %p128, %p129
      %s132 = sadd.s32 %s131, 1
      %p135 = scmp.eq.s32.totalorder %s18, 5
      %p136 = scmp.ne.s32.totalorder %s131, %s133
      %p137 = scmp.eq.s32.totalorder %s18, 0
      %p138 = por %p136, %p137
      %p139 = scmp.ne.s32.totalorder %s131, %s133
      %p140 = scmp.eq.s32.totalorder %s23, 5
      %p141 = por %p139, %p140
      %p142 = scmp.ne.s32.totalorder %s133, %s134
      %p143 = scmp.eq.s32.totalorder %s23, 0
      %p144 = por %p142, %p143
      %p145 = scmp.ne.s32.totalorder %s133, %s134
      %p146 = scmp.eq.s32.totalorder %s24, 5
      %p147 = por %p145, %p146
      %p149 = scmp.ne.s32.totalorder %s134, %s148
      %p150 = scmp.eq.s32.totalorder %s24, 0
      %p151 = por %p149, %p150
      %s152 = ssub.s32 %s25, %s37
      %p153 = scmp.eq.s32.totalorder %s152, 0
      %s155 = sadd.s32 %s154, 1
      %s156 = scalar_select %p153, %s154, %s155
      %p159 = pneg %p153
      %p160 = scmp.eq.s32.totalorder %s18, 5
      %p161 = por %p159, %p160
      %p162 = scmp.ne.s32.totalorder %s154, %s157
      %p163 = scmp.eq.s32.totalorder %s18, 0
      %p164 = por %p162, %p163
      %p165 = scmp.ne.s32.totalorder %s154, %s157
      %p166 = scmp.eq.s32.totalorder %s23, 5
      %p167 = por %p165, %p166
      %p168 = scmp.ne.s32.totalorder %s157, %s158
      %p169 = scmp.eq.s32.totalorder %s23, 0
      %p170 = por %p168, %p169
      %p171 = scmp.ne.s32.totalorder %s157, %s158
      %p172 = scmp.eq.s32.totalorder %s24, 5
      %p173 = por %p171, %p172
      %p175 = scmp.ne.s32.totalorder %s158, %s174
      %p176 = scmp.eq.s32.totalorder %s24, 0
      %p177 = por %p175, %p176
      %p178 = scmp.le.s32.totalorder 1, %s18
      %p179 = scmp.lt.s32.totalorder %s18, 7
      %p180 = pnand %p178, %p179
      %p181 = pneg %p180
      // Predicated region
      $region9: #{tpu_custom_call.1} parent=5 // pred_check
        _
      $region10: #{tpu_custom_call.1} parent=5 // pred_check_branch
        %183 = sbr.rel (%p180) target = $region12
      $region11: #{tpu_custom_call.1} parent=5 // pred_region
        %s184 = ssub.s32 %s18, 1
        // Predicated region
        $region13: #{tpu_custom_call.1} parent=11 // pred_check
          %p185 = pneg %p81
        $region14: #{tpu_custom_call.1} parent=11 // pred_check_branch
          %187 = sbr.rel (%p185) target = $region16
        $region15: #{tpu_custom_call.1} parent=11 // pred_region
          %s189 = ssub.s32 2048, 2048
          %190 = vsyncadd [#allocation7], %s189
          %s191 = sshll.u32 [#allocation6], 4
          %s192 = int_to_ptr.vmem [resolvable:$true] %s191
          %197 = dma.hbm_to_vmem [thread:$0]  %s1, 2048, %s192, [#allocation7], 64, 64, 4
        $region16: #{tpu_custom_call.1} parent=11 // pred_fallthru
          _
        // Predicated region
        $region17: #{tpu_custom_call.1} parent=11 // pred_check
          %p198 = pneg %p102
        $region18: #{tpu_custom_call.1} parent=11 // pred_check_branch
          %200 = sbr.rel (%p198) target = $region20
        $region19: #{tpu_custom_call.1} parent=11 // pred_region
          _
        $region20: #{tpu_custom_call.1} parent=11 // pred_fallthru
          _
        // Predicated region
        $region21: #{tpu_custom_call.1} parent=11 // pred_check
          %p201 = pneg %p123
        $region22: #{tpu_custom_call.1} parent=11 // pred_check_branch
          %203 = sbr.rel (%p201) target = $region24
        $region23: #{tpu_custom_call.1} parent=11 // pred_region
          %s205 = ssub.s32 8192, 8192
          %206 = vsyncadd [#allocation7], %s205
          %s207 = sshll.u32 [#allocation8], 4
          %s208 = int_to_ptr.vmem [resolvable:$true] %s207
          %213 = dma.hbm_to_vmem [thread:$0]  %s3, 8192, %s208, [#allocation7], 512, 512, 32
        $region24: #{tpu_custom_call.1} parent=11 // pred_fallthru
          _
        // Predicated region
        $region25: #{tpu_custom_call.1} parent=11 // pred_check
          %p214 = pneg %p144
        $region26: #{tpu_custom_call.1} parent=11 // pred_check_branch
          %216 = sbr.rel (%p214) target = $region28
        $region27: #{tpu_custom_call.1} parent=11 // pred_region
          _
        $region28: #{tpu_custom_call.1} parent=11 // pred_fallthru
          _
      $region12: #{tpu_custom_call.1} parent=5 // pred_fallthru
        _
      %p217 = scmp.lt.s32.totalorder %s18, 6
      // Predicated region
      $region29: #{tpu_custom_call.1} parent=5 // pred_check
        %p218 = pneg %p217
      $region30: #{tpu_custom_call.1} parent=5 // pred_check_branch
        %220 = sbr.rel (%p218) target = $region32
      $region31: #{tpu_custom_call.1} parent=5 // pred_region
        // Predicated region
        $region33: #{tpu_custom_call.1} parent=31 // pred_check
          %p221 = pneg %p54
        $region34: #{tpu_custom_call.1} parent=31 // pred_check_branch
          %223 = sbr.rel (%p221) target = $region36
        $region35: #{tpu_custom_call.1} parent=31 // pred_region
          %s224 = sand.u32 %s44, 1
          %s225 = scalar_lea.sflag [#allocation4], %s224
          %s226 = sand.u32 %s44, 1
          %s227 = smul.addr %s226, 16
          %s228 = scalar_lea.vmem [#allocation3], %s227
          %s229 = smul.u32 %s25, 3
          %s230 = sadd.s32 %s229, %s26
          %s231 = smul.u32 2, %s230
          %s233 = ssub.s32 256, 256
          %234 = vsyncadd %s225, %s233
          %s235 = smul.addr %s231, 2
          %s236 = smul.addr %s235, 64
          %s237 = scalar_lea.hbm %s0, %s236
          %s238 = sshll.u32 %s228, 4
          %s239 = int_to_ptr.vmem [resolvable:$true] %s238
          %244 = dma.hbm_to_vmem [thread:$0]  %s237, 256, %s239, %s225, 128, 128, 8
        $region36: #{tpu_custom_call.1} parent=31 // pred_fallthru
          _
      $region32: #{tpu_custom_call.1} parent=5 // pred_fallthru
        _
      %p245 = scmp.le.s32.totalorder 1, %s18
      %p246 = scmp.lt.s32.totalorder %s18, 7
      %p247 = pnand %p245, %p246
      %p248 = pneg %p247
      // Predicated region
      $region37: #{tpu_custom_call.1} parent=5 // pred_check
        _
      $region38: #{tpu_custom_call.1} parent=5 // pred_check_branch
        %250 = sbr.rel (%p247) target = $region40
      $region39: #{tpu_custom_call.1} parent=5 // pred_region
        %s251 = ssub.s32 %s18, 1
        %s252 = sand.u32 %s47, 1
        %s253 = scalar_lea.sflag [#allocation4], %s252
        %s254 = sand.u32 %s47, 1
        %s255 = smul.addr %s254, 16
        %s256 = scalar_lea.vmem [#allocation3], %s255
        // Predicated region
        $region41: #{tpu_custom_call.1} parent=39 // pred_check
          %p257 = pneg %p60
        $region42: #{tpu_custom_call.1} parent=39 // pred_check_branch
          %259 = sbr.rel (%p257) target = $region44
        $region43: #{tpu_custom_call.1} parent=39 // pred_region
          %260 = dma.done %s253, 256
        $region44: #{tpu_custom_call.1} parent=39 // pred_fallthru
          _
        // Predicated region
        $region45: #{tpu_custom_call.1} parent=39 // pred_check
          %p261 = pneg %p81
        $region46: #{tpu_custom_call.1} parent=39 // pred_check_branch
          %263 = sbr.rel (%p261) target = $region48
        $region47: #{tpu_custom_call.1} parent=39 // pred_region
          %264 = dma.done [#allocation7], 2048
        $region48: #{tpu_custom_call.1} parent=39 // pred_fallthru
          _
        // Predicated region
        $region49: #{tpu_custom_call.1} parent=39 // pred_check
          %p265 = pneg %p123
        $region50: #{tpu_custom_call.1} parent=39 // pred_check_branch
          %267 = sbr.rel (%p265) target = $region52
        $region51: #{tpu_custom_call.1} parent=39 // pred_region
          %268 = dma.done [#allocation7], 8192
        $region52: #{tpu_custom_call.1} parent=39 // pred_fallthru
          _
        %s269 = sand.u32 %s47, 1
        %s270 = scalar_lea.sflag [#allocation4], %s269
        %s271 = sand.u32 %s47, 1
        %s272 = smul.addr %s271, 16
        %s273 = scalar_lea.vmem [#allocation3], %s272
        %p274 = pneg %p60
        %p275 = pneg %p57
        %p276 = pneg %p81
        %p277 = pneg %p78
        %p278 = pneg %p102
        %p279 = pneg %p99
        %p280 = pneg %p123
        %p281 = pneg %p120
        %p282 = pneg %p144
        %p283 = pneg %p141
        %p284 = pneg %p170
        %p285 = pneg %p167
        %s286 = sand.u32 %s157, 1
        %s287 = scalar_lea.sflag [#allocation5], %s286
        %s288 = sand.u32 %s157, 1
        %s289 = smul.addr %s288, 64
        %s290 = scalar_lea.vmem [#allocation9], %s289
        %s291 = smul.u32 %s27, 3
        %s292 = sadd.s32 %s291, %s28
        %s293 = smul.u32 2, %s292
        %p295 = scmp.eq.s32.totalorder %s28, 0
        // Predicated region
        $region53: #{tpu_custom_call.1} parent=39 // pred_check
          %p296 = pneg %p295
        $region54: #{tpu_custom_call.1} parent=39 // pred_check_branch
          %298 = sbr.rel (%p296) target = $region56
        $region55: #{tpu_custom_call.1} parent=39 // pred_region
          %299 = vst [vmem:[#allocation2] sm:$0xff] 0.0
        $region56: #{tpu_custom_call.1} parent=39 // pred_fallthru
          _
        %v300 = vld [vmem:[%s256] sm:$0xff]
        %v301 = vld [vmem:[%s256 + $0x8] sm:$0xff]
        %v302 = vld [vmem:[#allocation6] sm:$0xf]
        %v303 = vld [vmem:[#allocation6 + $0x4] sm:$0xf]
        %v304 = vld [vmem:[#allocation6 + $0x8] sm:$0xf]
        %v305 = vld [vmem:[#allocation6 + $0xc] sm:$0xf]
        %v306 = vld [vmem:[#allocation6 + $0x10] sm:$0xf]
        %v307 = vld [vmem:[#allocation6 + $0x14] sm:$0xf]
        %v308 = vld [vmem:[#allocation6 + $0x18] sm:$0xf]
        %v309 = vld [vmem:[#allocation6 + $0x1c] sm:$0xf]
        %v310 = vld [vmem:[#allocation6 + $0x20] sm:$0xf]
        %v311 = vld [vmem:[#allocation6 + $0x24] sm:$0xf]
        %v312 = vld [vmem:[#allocation6 + $0x28] sm:$0xf]
        %v313 = vld [vmem:[#allocation6 + $0x2c] sm:$0xf]
        %v314 = vld [vmem:[#allocation6 + $0x30] sm:$0xf]
        %v315 = vld [vmem:[#allocation6 + $0x34] sm:$0xf]
        %v316 = vld [vmem:[#allocation6 + $0x38] sm:$0xf]
        %v317 = vld [vmem:[#allocation6 + $0x3c] sm:$0xf]
        %v318 = vld [vmem:[#allocation6 + $0x40] sm:$0xf]
        %v319 = vld [vmem:[#allocation6 + $0x44] sm:$0xf]
        %v320 = vld [vmem:[#allocation6 + $0x48] sm:$0xf]
        %v321 = vld [vmem:[#allocation6 + $0x4c] sm:$0xf]
        %v322 = vld [vmem:[#allocation6 + $0x50] sm:$0xf]
        %v323 = vld [vmem:[#allocation6 + $0x54] sm:$0xf]
        %v324 = vld [vmem:[#allocation6 + $0x58] sm:$0xf]
        %v325 = vld [vmem:[#allocation6 + $0x5c] sm:$0xf]
        %v326 = vld [vmem:[#allocation6 + $0x60] sm:$0xf]
        %v327 = vld [vmem:[#allocation6 + $0x64] sm:$0xf]
        %v328 = vld [vmem:[#allocation6 + $0x68] sm:$0xf]
        %v329 = vld [vmem:[#allocation6 + $0x6c] sm:$0xf]
        %v330 = vld [vmem:[#allocation6 + $0x70] sm:$0xf]
        %v331 = vld [vmem:[#allocation6 + $0x74] sm:$0xf]
        %v332 = vld [vmem:[#allocation6 + $0x78] sm:$0xf]
        %v333 = vld [vmem:[#allocation6 + $0x7c] sm:$0xf]
        %v334 = vld [vmem:[%s2] sm:$0x1]
        %v336 = vlaneseq
        %v337 = vshrl.u32 %v336, 7
        %v338 = vsub.s32 0, %v337
        %v339 = vrot.slane %v334, %v338
        %v343 = vunpack.c.l.b16 %v300
        %v344 = vunpack.c.h.b16 %v300
        %v345 = vunpack.c.l.b16 %v301
        %v346 = vunpack.c.h.b16 %v301
        %v347 = vpack.c.b16 %v345, %v343
        %v348 = vpack.c.b16 %v346, %v344
        %v383 = vunpack.c.l.b16 %v302
        %v384 = vunpack.c.l.b16 %v303
        %v385 = vunpack.c.l.b16 %v304
        %v386 = vunpack.c.l.b16 %v305
        %v387 = vunpack.c.l.b16 %v306
        %v388 = vunpack.c.l.b16 %v307
        %v389 = vunpack.c.l.b16 %v308
        %v390 = vunpack.c.l.b16 %v309
        %v391 = vunpack.c.l.b16 %v310
        %v392 = vunpack.c.l.b16 %v311
        %v393 = vunpack.c.l.b16 %v312
        %v394 = vunpack.c.l.b16 %v313
        %v395 = vunpack.c.l.b16 %v314
        %v396 = vunpack.c.l.b16 %v315
        %v397 = vunpack.c.l.b16 %v316
        %v398 = vunpack.c.l.b16 %v317
        %v399 = vunpack.c.l.b16 %v318
        %v400 = vunpack.c.l.b16 %v319
        %v401 = vunpack.c.l.b16 %v320
        %v402 = vunpack.c.l.b16 %v321
        %v403 = vunpack.c.l.b16 %v322
        %v404 = vunpack.c.l.b16 %v323
        %v405 = vunpack.c.l.b16 %v324
        %v406 = vunpack.c.l.b16 %v325
        %v407 = vunpack.c.l.b16 %v326
        %v408 = vunpack.c.l.b16 %v327
        %v409 = vunpack.c.l.b16 %v328
        %v410 = vunpack.c.l.b16 %v329
        %v411 = vunpack.c.l.b16 %v330
        %v412 = vunpack.c.l.b16 %v331
        %v413 = vunpack.c.l.b16 %v332
        %v414 = vunpack.c.l.b16 %v333
        %v415 = vpack.c.b16 %v384, %v383
        %v416 = vpack.c.b16 %v386, %v385
        %v417 = vpack.c.b16 %v388, %v387
        %v418 = vpack.c.b16 %v390, %v389
        %v419 = vpack.c.b16 %v392, %v391
        %v420 = vpack.c.b16 %v394, %v393
        %v421 = vpack.c.b16 %v396, %v395
        %v422 = vpack.c.b16 %v398, %v397
        %v423 = vpack.c.b16 %v400, %v399
        %v424 = vpack.c.b16 %v402, %v401
        %v425 = vpack.c.b16 %v404, %v403
        %v426 = vpack.c.b16 %v406, %v405
        %v427 = vpack.c.b16 %v408, %v407
        %v428 = vpack.c.b16 %v410, %v409
        %v429 = vpack.c.b16 %v412, %v411
        %v430 = vpack.c.b16 %v414, %v413
        %447 = vmatprep.subr.bf16.mxu0 0
        %448 = vmatpush1.bf16.msra.mxu0 %v415
        %449 = vmatprep.subr.bf16.mxu0 0
        %450 = vmatpush1.bf16.msra.mxu0 %v416
        %451 = vmatprep.subr.bf16.mxu0 0
        %452 = vmatpush1.bf16.msra.mxu0 %v417
        %453 = vmatprep.subr.bf16.mxu0 0
        %454 = vmatpush1.bf16.msra.mxu0 %v418
        %455 = vmatprep.subr.bf16.mxu0 0
        %456 = vmatpush1.bf16.msra.mxu0 %v419
        %457 = vmatprep.subr.bf16.mxu0 0
        %458 = vmatpush1.bf16.msra.mxu0 %v420
        %459 = vmatprep.subr.bf16.mxu0 0
        %460 = vmatpush1.bf16.msra.mxu0 %v421
        %461 = vmatprep.subr.bf16.mxu0 0
        %462 = vmatpush1.bf16.msra.mxu0 %v422
        %463 = vmatprep.subr.bf16.mxu0 0
        %464 = vmatpush1.bf16.msra.mxu0 %v423
        %465 = vmatprep.subr.bf16.mxu0 0
        %466 = vmatpush1.bf16.msra.mxu0 %v424
        %467 = vmatprep.subr.bf16.mxu0 0
        %468 = vmatpush1.bf16.msra.mxu0 %v425
        %469 = vmatprep.subr.bf16.mxu0 0
        %470 = vmatpush1.bf16.msra.mxu0 %v426
        %471 = vmatprep.subr.bf16.mxu0 0
        %472 = vmatpush1.bf16.msra.mxu0 %v427
        %473 = vmatprep.subr.bf16.mxu0 0
        %474 = vmatpush1.bf16.msra.mxu0 %v428
        %475 = vmatprep.subr.bf16.mxu0 0
        %476 = vmatpush1.bf16.msra.mxu0 %v429
        %477 = vmatprep.subr.bf16.mxu0 0
        %478 = vmatpush1.bf16.msra.mxu0 %v430
        %479 = vmatprep.mubr.bf16.mxu0 %v348
        %480 = vmatmul.mubr.bf16.gmra.mrb[0].mxu0 %v347
        %v481 = vpop.f32.mrb[0].mxu0
        %v482 = vadd.f32 %v339, %v481
        %v483 = vpop.f32.mrb[0].mxu0
        %v484 = vpop.f32.mrb[0].mxu0
        %v485 = vadd.f32 %v339, %v484
        %v486 = vpop.f32.mrb[0].mxu0
        %487 = vdwg.mxu0
        %v488 = vmax.f32 %v482, 0.0
        %v489 = vmax.f32 %v485, 0.0
        %v490 = vpack.c.bf16 %v489, %v488
        %v491 = vld [vmem:[#allocation8] sm:$0xff]
        %v492 = vld [vmem:[#allocation8 + $0x8] sm:$0xff]
        %v493 = vld [vmem:[#allocation8 + $0x10] sm:$0xff]
        %v494 = vld [vmem:[#allocation8 + $0x18] sm:$0xff]
        %v495 = vld [vmem:[#allocation8 + $0x20] sm:$0xff]
        %v496 = vld [vmem:[#allocation8 + $0x28] sm:$0xff]
        %v497 = vld [vmem:[#allocation8 + $0x30] sm:$0xff]
        %v498 = vld [vmem:[#allocation8 + $0x38] sm:$0xff]
        %v499 = vld [vmem:[#allocation8 + $0x40] sm:$0xff]
        %v500 = vld [vmem:[#allocation8 + $0x48] sm:$0xff]
        %v501 = vld [vmem:[#allocation8 + $0x50] sm:$0xff]
        %v502 = vld [vmem:[#allocation8 + $0x58] sm:$0xff]
        %v503 = vld [vmem:[#allocation8 + $0x60] sm:$0xff]
        %v504 = vld [vmem:[#allocation8 + $0x68] sm:$0xff]
        %v505 = vld [vmem:[#allocation8 + $0x70] sm:$0xff]
        %v506 = vld [vmem:[#allocation8 + $0x78] sm:$0xff]
        %v507 = vld [vmem:[#allocation8 + $0x80] sm:$0xff]
        %v508 = vld [vmem:[#allocation8 + $0x88] sm:$0xff]
        %v509 = vld [vmem:[#allocation8 + $0x90] sm:$0xff]
        %v510 = vld [vmem:[#allocation8 + $0x98] sm:$0xff]
        %v511 = vld [vmem:[#allocation8 + $0xa0] sm:$0xff]
        %v512 = vld [vmem:[#allocation8 + $0xa8] sm:$0xff]
        %v513 = vld [vmem:[#allocation8 + $0xb0] sm:$0xff]
        %v514 = vld [vmem:[#allocation8 + $0xb8] sm:$0xff]
        %v515 = vld [vmem:[#allocation8 + $0xc0] sm:$0xff]
        %v516 = vld [vmem:[#allocation8 + $0xc8] sm:$0xff]
        %v517 = vld [vmem:[#allocation8 + $0xd0] sm:$0xff]
        %v518 = vld [vmem:[#allocation8 + $0xd8] sm:$0xff]
        %v519 = vld [vmem:[#allocation8 + $0xe0] sm:$0xff]
        %v520 = vld [vmem:[#allocation8 + $0xe8] sm:$0xff]
        %v521 = vld [vmem:[#allocation8 + $0xf0] sm:$0xff]
        %v522 = vld [vmem:[#allocation8 + $0xf8] sm:$0xff]
        %v523 = vld [vmem:[#allocation8 + $0x100] sm:$0xff]
        %v524 = vld [vmem:[#allocation8 + $0x108] sm:$0xff]
        %v525 = vld [vmem:[#allocation8 + $0x110] sm:$0xff]
        %v526 = vld [vmem:[#allocation8 + $0x118] sm:$0xff]
        %v527 = vld [vmem:[#allocation8 + $0x120] sm:$0xff]
        %v528 = vld [vmem:[#allocation8 + $0x128] sm:$0xff]
        %v529 = vld [vmem:[#allocation8 + $0x130] sm:$0xff]
        %v530 = vld [vmem:[#allocation8 + $0x138] sm:$0xff]
        %v531 = vld [vmem:[#allocation8 + $0x140] sm:$0xff]
        %v532 = vld [vmem:[#allocation8 + $0x148] sm:$0xff]
        %v533 = vld [vmem:[#allocation8 + $0x150] sm:$0xff]
        %v534 = vld [vmem:[#allocation8 + $0x158] sm:$0xff]
        %v535 = vld [vmem:[#allocation8 + $0x160] sm:$0xff]
        %v536 = vld [vmem:[#allocation8 + $0x168] sm:$0xff]
        %v537 = vld [vmem:[#allocation8 + $0x170] sm:$0xff]
        %v538 = vld [vmem:[#allocation8 + $0x178] sm:$0xff]
        %v539 = vld [vmem:[#allocation8 + $0x180] sm:$0xff]
        %v540 = vld [vmem:[#allocation8 + $0x188] sm:$0xff]
        %v541 = vld [vmem:[#allocation8 + $0x190] sm:$0xff]
        %v542 = vld [vmem:[#allocation8 + $0x198] sm:$0xff]
        %v543 = vld [vmem:[#allocation8 + $0x1a0] sm:$0xff]
        %v544 = vld [vmem:[#allocation8 + $0x1a8] sm:$0xff]
        %v545 = vld [vmem:[#allocation8 + $0x1b0] sm:$0xff]
        %v546 = vld [vmem:[#allocation8 + $0x1b8] sm:$0xff]
        %v547 = vld [vmem:[#allocation8 + $0x1c0] sm:$0xff]
        %v548 = vld [vmem:[#allocation8 + $0x1c8] sm:$0xff]
        %v549 = vld [vmem:[#allocation8 + $0x1d0] sm:$0xff]
        %v550 = vld [vmem:[#allocation8 + $0x1d8] sm:$0xff]
        %v551 = vld [vmem:[#allocation8 + $0x1e0] sm:$0xff]
        %v552 = vld [vmem:[#allocation8 + $0x1e8] sm:$0xff]
        %v553 = vld [vmem:[#allocation8 + $0x1f0] sm:$0xff]
        %v554 = vld [vmem:[#allocation8 + $0x1f8] sm:$0xff]
        %v555 = vld [vmem:[%s4] sm:$0xff]
        %v557 = vlaneseq
        %v558 = vshrl.u32 %v557, 7
        %v559 = vsub.s32 0, %v558
        %v560 = vrot.slane %v555, %v559
        %v561 = vlaneseq
        %v562 = vshrl.u32 %v561, 7
        %v563 = vsub.s32 1, %v562
        %v564 = vrot.slane %v555, %v563
        %v565 = vlaneseq
        %v566 = vshrl.u32 %v565, 7
        %v567 = vsub.s32 2, %v566
        %v568 = vrot.slane %v555, %v567
        %v569 = vlaneseq
        %v570 = vshrl.u32 %v569, 7
        %v571 = vsub.s32 3, %v570
        %v572 = vrot.slane %v555, %v571
        %v573 = vlaneseq
        %v574 = vshrl.u32 %v573, 7
        %v575 = vsub.s32 4, %v574
        %v576 = vrot.slane %v555, %v575
        %v577 = vlaneseq
        %v578 = vshrl.u32 %v577, 7
        %v579 = vsub.s32 5, %v578
        %v580 = vrot.slane %v555, %v579
        %v581 = vlaneseq
        %v582 = vshrl.u32 %v581, 7
        %v583 = vsub.s32 6, %v582
        %v584 = vrot.slane %v555, %v583
        %v585 = vlaneseq
        %v586 = vshrl.u32 %v585, 7
        %v587 = vsub.s32 7, %v586
        %v588 = vrot.slane %v555, %v587
        %v661 = vunpack.c.l.b16 %v491
        %v662 = vunpack.c.h.b16 %v491
        %v663 = vunpack.c.l.b16 %v492
        %v664 = vunpack.c.h.b16 %v492
        %v665 = vunpack.c.l.b16 %v493
        %v666 = vunpack.c.h.b16 %v493
        %v667 = vunpack.c.l.b16 %v494
        %v668 = vunpack.c.h.b16 %v494
        %v669 = vunpack.c.l.b16 %v495
        %v670 = vunpack.c.h.b16 %v495
        %v671 = vunpack.c.l.b16 %v496
        %v672 = vunpack.c.h.b16 %v496
        %v673 = vunpack.c.l.b16 %v497
        %v674 = vunpack.c.h.b16 %v497
        %v675 = vunpack.c.l.b16 %v498
        %v676 = vunpack.c.h.b16 %v498
        %v677 = vunpack.c.l.b16 %v499
        %v678 = vunpack.c.h.b16 %v499
        %v679 = vunpack.c.l.b16 %v500
        %v680 = vunpack.c.h.b16 %v500
        %v681 = vunpack.c.l.b16 %v501
        %v682 = vunpack.c.h.b16 %v501
        %v683 = vunpack.c.l.b16 %v502
        %v684 = vunpack.c.h.b16 %v502
        %v685 = vunpack.c.l.b16 %v503
        %v686 = vunpack.c.h.b16 %v503
        %v687 = vunpack.c.l.b16 %v504
        %v688 = vunpack.c.h.b16 %v504
        %v689 = vunpack.c.l.b16 %v505
        %v690 = vunpack.c.h.b16 %v505
        %v691 = vunpack.c.l.b16 %v506
        %v692 = vunpack.c.h.b16 %v506
        %v693 = vunpack.c.l.b16 %v507
        %v694 = vunpack.c.h.b16 %v507
        %v695 = vunpack.c.l.b16 %v508
        %v696 = vunpack.c.h.b16 %v508
        %v697 = vunpack.c.l.b16 %v509
        %v698 = vunpack.c.h.b16 %v509
        %v699 = vunpack.c.l.b16 %v510
        %v700 = vunpack.c.h.b16 %v510
        %v701 = vunpack.c.l.b16 %v511
        %v702 = vunpack.c.h.b16 %v511
        %v703 = vunpack.c.l.b16 %v512
        %v704 = vunpack.c.h.b16 %v512
        %v705 = vunpack.c.l.b16 %v513
        %v706 = vunpack.c.h.b16 %v513
        %v707 = vunpack.c.l.b16 %v514
        %v708 = vunpack.c.h.b16 %v514
        %v709 = vunpack.c.l.b16 %v515
        %v710 = vunpack.c.h.b16 %v515
        %v711 = vunpack.c.l.b16 %v516
        %v712 = vunpack.c.h.b16 %v516
        %v713 = vunpack.c.l.b16 %v517
        %v714 = vunpack.c.h.b16 %v517
        %v715 = vunpack.c.l.b16 %v518
        %v716 = vunpack.c.h.b16 %v518
        %v717 = vunpack.c.l.b16 %v519
        %v718 = vunpack.c.h.b16 %v519
        %v719 = vunpack.c.l.b16 %v520
        %v720 = vunpack.c.h.b16 %v520
        %v721 = vunpack.c.l.b16 %v521
        %v722 = vunpack.c.h.b16 %v521
        %v723 = vunpack.c.l.b16 %v522
        %v724 = vunpack.c.h.b16 %v522
        %v725 = vunpack.c.l.b16 %v523
        %v726 = vunpack.c.h.b16 %v523
        %v727 = vunpack.c.l.b16 %v524
        %v728 = vunpack.c.h.b16 %v524
        %v729 = vunpack.c.l.b16 %v525
        %v730 = vunpack.c.h.b16 %v525
        %v731 = vunpack.c.l.b16 %v526
        %v732 = vunpack.c.h.b16 %v526
        %v733 = vunpack.c.l.b16 %v527
        %v734 = vunpack.c.h.b16 %v527
        %v735 = vunpack.c.l.b16 %v528
        %v736 = vunpack.c.h.b16 %v528
        %v737 = vunpack.c.l.b16 %v529
        %v738 = vunpack.c.h.b16 %v529
        %v739 = vunpack.c.l.b16 %v530
        %v740 = vunpack.c.h.b16 %v530
        %v741 = vunpack.c.l.b16 %v531
        %v742 = vunpack.c.h.b16 %v531
        %v743 = vunpack.c.l.b16 %v532
        %v744 = vunpack.c.h.b16 %v532
        %v745 = vunpack.c.l.b16 %v533
        %v746 = vunpack.c.h.b16 %v533
        %v747 = vunpack.c.l.b16 %v534
        %v748 = vunpack.c.h.b16 %v534
        %v749 = vunpack.c.l.b16 %v535
        %v750 = vunpack.c.h.b16 %v535
        %v751 = vunpack.c.l.b16 %v536
        %v752 = vunpack.c.h.b16 %v536
        %v753 = vunpack.c.l.b16 %v537
        %v754 = vunpack.c.h.b16 %v537
        %v755 = vunpack.c.l.b16 %v538
        %v756 = vunpack.c.h.b16 %v538
        %v757 = vunpack.c.l.b16 %v539
        %v758 = vunpack.c.h.b16 %v539
        %v759 = vunpack.c.l.b16 %v540
        %v760 = vunpack.c.h.b16 %v540
        %v761 = vunpack.c.l.b16 %v541
        %v762 = vunpack.c.h.b16 %v541
        %v763 = vunpack.c.l.b16 %v542
        %v764 = vunpack.c.h.b16 %v542
        %v765 = vunpack.c.l.b16 %v543
        %v766 = vunpack.c.h.b16 %v543
        %v767 = vunpack.c.l.b16 %v544
        %v768 = vunpack.c.h.b16 %v544
        %v769 = vunpack.c.l.b16 %v545
        %v770 = vunpack.c.h.b16 %v545
        %v771 = vunpack.c.l.b16 %v546
        %v772 = vunpack.c.h.b16 %v546
        %v773 = vunpack.c.l.b16 %v547
        %v774 = vunpack.c.h.b16 %v547
        %v775 = vunpack.c.l.b16 %v548
        %v776 = vunpack.c.h.b16 %v548
        %v777 = vunpack.c.l.b16 %v549
        %v778 = vunpack.c.h.b16 %v549
        %v779 = vunpack.c.l.b16 %v550
        %v780 = vunpack.c.h.b16 %v550
        %v781 = vunpack.c.l.b16 %v551
        %v782 = vunpack.c.h.b16 %v551
        %v783 = vunpack.c.l.b16 %v552
        %v784 = vunpack.c.h.b16 %v552
        %v785 = vunpack.c.l.b16 %v553
        %v786 = vunpack.c.h.b16 %v553
        %v787 = vunpack.c.l.b16 %v554
        %v788 = vunpack.c.h.b16 %v554
        %v789 = vpack.c.b16 %v669, %v661
        %v790 = vpack.c.b16 %v670, %v662
        %v791 = vpack.c.b16 %v671, %v663
        %v792 = vpack.c.b16 %v672, %v664
        %v793 = vpack.c.b16 %v673, %v665
        %v794 = vpack.c.b16 %v674, %v666
        %v795 = vpack.c.b16 %v675, %v667
        %v796 = vpack.c.b16 %v676, %v668
        %v797 = vpack.c.b16 %v685, %v677
        %v798 = vpack.c.b16 %v686, %v678
        %v799 = vpack.c.b16 %v687, %v679
        %v800 = vpack.c.b16 %v688, %v680
        %v801 = vpack.c.b16 %v689, %v681
        %v802 = vpack.c.b16 %v690, %v682
        %v803 = vpack.c.b16 %v691, %v683
        %v804 = vpack.c.b16 %v692, %v684
        %v805 = vpack.c.b16 %v701, %v693
        %v806 = vpack.c.b16 %v702, %v694
        %v807 = vpack.c.b16 %v703, %v695
        %v808 = vpack.c.b16 %v704, %v696
        %v809 = vpack.c.b16 %v705, %v697
        %v810 = vpack.c.b16 %v706, %v698
        %v811 = vpack.c.b16 %v707, %v699
        %v812 = vpack.c.b16 %v708, %v700
        %v813 = vpack.c.b16 %v717, %v709
        %v814 = vpack.c.b16 %v718, %v710
        %v815 = vpack.c.b16 %v719, %v711
        %v816 = vpack.c.b16 %v720, %v712
        %v817 = vpack.c.b16 %v721, %v713
        %v818 = vpack.c.b16 %v722, %v714
        %v819 = vpack.c.b16 %v723, %v715
        %v820 = vpack.c.b16 %v724, %v716
        %v821 = vpack.c.b16 %v733, %v725
        %v822 = vpack.c.b16 %v734, %v726
        %v823 = vpack.c.b16 %v735, %v727
        %v824 = vpack.c.b16 %v736, %v728
        %v825 = vpack.c.b16 %v737, %v729
        %v826 = vpack.c.b16 %v738, %v730
        %v827 = vpack.c.b16 %v739, %v731
        %v828 = vpack.c.b16 %v740, %v732
        %v829 = vpack.c.b16 %v749, %v741
        %v830 = vpack.c.b16 %v750, %v742
        %v831 = vpack.c.b16 %v751, %v743
        %v832 = vpack.c.b16 %v752, %v744
        %v833 = vpack.c.b16 %v753, %v745
        %v834 = vpack.c.b16 %v754, %v746
        %v835 = vpack.c.b16 %v755, %v747
        %v836 = vpack.c.b16 %v756, %v748
        %v837 = vpack.c.b16 %v765, %v757
        %v838 = vpack.c.b16 %v766, %v758
        %v839 = vpack.c.b16 %v767, %v759
        %v840 = vpack.c.b16 %v768, %v760
        %v841 = vpack.c.b16 %v769, %v761
        %v842 = vpack.c.b16 %v770, %v762
        %v843 = vpack.c.b16 %v771, %v763
        %v844 = vpack.c.b16 %v772, %v764
        %v845 = vpack.c.b16 %v781, %v773
        %v846 = vpack.c.b16 %v782, %v774
        %v847 = vpack.c.b16 %v783, %v775
        %v848 = vpack.c.b16 %v784, %v776
        %v849 = vpack.c.b16 %v785, %v777
        %v850 = vpack.c.b16 %v786, %v778
        %v851 = vpack.c.b16 %v787, %v779
        %v852 = vpack.c.b16 %v788, %v780
        %917 = vmatprep.subr.bf16.mxu0 %v790
        %918 = vmatpush1.bf16.msra.mxu0 %v789
        %919 = vmatprep.subr.bf16.mxu0 %v798
        %920 = vmatpush1.bf16.msra.mxu0 %v797
        %921 = vmatprep.subr.bf16.mxu0 %v806
        %922 = vmatpush1.bf16.msra.mxu0 %v805
        %923 = vmatprep.subr.bf16.mxu0 %v814
        %924 = vmatpush1.bf16.msra.mxu0 %v813
        %925 = vmatprep.subr.bf16.mxu0 %v822
        %926 = vmatpush1.bf16.msra.mxu0 %v821
        %927 = vmatprep.subr.bf16.mxu0 %v830
        %928 = vmatpush1.bf16.msra.mxu0 %v829
        %929 = vmatprep.subr.bf16.mxu0 %v838
        %930 = vmatpush1.bf16.msra.mxu0 %v837
        %931 = vmatprep.subr.bf16.mxu0 %v846
        %932 = vmatpush1.bf16.msra.mxu0 %v845
        %933 = vmatprep.subr.bf16.mxu0 0
        %934 = vmatpush1.bf16.msra.mxu0 0
        %935 = vmatprep.subr.bf16.mxu0 0
        %936 = vmatpush1.bf16.msra.mxu0 0
        %937 = vmatprep.subr.bf16.mxu0 0
        %938 = vmatpush1.bf16.msra.mxu0 0
        %939 = vmatprep.subr.bf16.mxu0 0
        %940 = vmatpush1.bf16.msra.mxu0 0
        %941 = vmatprep.subr.bf16.mxu0 0
        %942 = vmatpush1.bf16.msra.mxu0 0
        %943 = vmatprep.subr.bf16.mxu0 0
        %944 = vmatpush1.bf16.msra.mxu0 0
        %945 = vmatprep.subr.bf16.mxu0 0
        %946 = vmatpush1.bf16.msra.mxu0 0
        %947 = vmatprep.subr.bf16.mxu0 0
        %948 = vmatpush1.bf16.msra.mxu0 0
        %949 = vmatprep.mubr.bf16.mxu0 0
        %950 = vmatmul.mubr.bf16.gmra.mrb[0].mxu0 %v490
        %v951 = vpop.f32.mrb[0].mxu0
        %v952 = vadd.f32 %v560, %v951
        %v953 = vpop.f32.mrb[0].mxu0
        %v954 = vadd.f32 %v564, %v953
        %v955 = vpop.f32.mrb[0].mxu0
        %v956 = vadd.f32 %v560, %v955
        %v957 = vpop.f32.mrb[0].mxu0
        %v958 = vadd.f32 %v564, %v957
        %959 = vdwg.mxu0
        %960 = vmatprep.subr.bf16.mxu0 %v792
        %961 = vmatpush1.bf16.msra.mxu0 %v791
        %962 = vmatprep.subr.bf16.mxu0 %v800
        %963 = vmatpush1.bf16.msra.mxu0 %v799
        %964 = vmatprep.subr.bf16.mxu0 %v808
        %965 = vmatpush1.bf16.msra.mxu0 %v807
        %966 = vmatprep.subr.bf16.mxu0 %v816
        %967 = vmatpush1.bf16.msra.mxu0 %v815
        %968 = vmatprep.subr.bf16.mxu0 %v824
        %969 = vmatpush1.bf16.msra.mxu0 %v823
        %970 = vmatprep.subr.bf16.mxu0 %v832
        %971 = vmatpush1.bf16.msra.mxu0 %v831
        %972 = vmatprep.subr.bf16.mxu0 %v840
        %973 = vmatpush1.bf16.msra.mxu0 %v839
        %974 = vmatprep.subr.bf16.mxu0 %v848
        %975 = vmatpush1.bf16.msra.mxu0 %v847
        %976 = vmatprep.subr.bf16.mxu0 0
        %977 = vmatpush1.bf16.msra.mxu0 0
        %978 = vmatprep.subr.bf16.mxu0 0
        %979 = vmatpush1.bf16.msra.mxu0 0
        %980 = vmatprep.subr.bf16.mxu0 0
        %981 = vmatpush1.bf16.msra.mxu0 0
        %982 = vmatprep.subr.bf16.mxu0 0
        %983 = vmatpush1.bf16.msra.mxu0 0
        %984 = vmatprep.subr.bf16.mxu0 0
        %985 = vmatpush1.bf16.msra.mxu0 0
        %986 = vmatprep.subr.bf16.mxu0 0
        %987 = vmatpush1.bf16.msra.mxu0 0
        %988 = vmatprep.subr.bf16.mxu0 0
        %989 = vmatpush1.bf16.msra.mxu0 0
        %990 = vmatprep.subr.bf16.mxu0 0
        %991 = vmatpush1.bf16.msra.mxu0 0
        %992 = vmatprep.mubr.bf16.mxu0 0
        %993 = vmatmul.mubr.bf16.gmra.mrb[0].mxu0 %v490
        %v994 = vpop.f32.mrb[0].mxu0
        %v995 = vadd.f32 %v568, %v994
        %v996 = vpop.f32.mrb[0].mxu0
        %v997 = vadd.f32 %v572, %v996
        %v998 = vpop.f32.mrb[0].mxu0
        %v999 = vadd.f32 %v568, %v998
        %v1000 = vpop.f32.mrb[0].mxu0
        %v1001 = vadd.f32 %v572, %v1000
        %1002 = vdwg.mxu0
        %1003 = vmatprep.subr.bf16.mxu0 %v794
        %1004 = vmatpush1.bf16.msra.mxu0 %v793
        %1005 = vmatprep.subr.bf16.mxu0 %v802
        %1006 = vmatpush1.bf16.msra.mxu0 %v801
        %1007 = vmatprep.subr.bf16.mxu0 %v810
        %1008 = vmatpush1.bf16.msra.mxu0 %v809
        %1009 = vmatprep.subr.bf16.mxu0 %v818
        %1010 = vmatpush1.bf16.msra.mxu0 %v817
        %1011 = vmatprep.subr.bf16.mxu0 %v826
        %1012 = vmatpush1.bf16.msra.mxu0 %v825
        %1013 = vmatprep.subr.bf16.mxu0 %v834
        %1014 = vmatpush1.bf16.msra.mxu0 %v833
        %1015 = vmatprep.subr.bf16.mxu0 %v842
        %1016 = vmatpush1.bf16.msra.mxu0 %v841
        %1017 = vmatprep.subr.bf16.mxu0 %v850
        %1018 = vmatpush1.bf16.msra.mxu0 %v849
        %1019 = vmatprep.subr.bf16.mxu0 0
        %1020 = vmatpush1.bf16.msra.mxu0 0
        %1021 = vmatprep.subr.bf16.mxu0 0
        %1022 = vmatpush1.bf16.msra.mxu0 0
        %1023 = vmatprep.subr.bf16.mxu0 0
        %1024 = vmatpush1.bf16.msra.mxu0 0
        %1025 = vmatprep.subr.bf16.mxu0 0
        %1026 = vmatpush1.bf16.msra.mxu0 0
        %1027 = vmatprep.subr.bf16.mxu0 0
        %1028 = vmatpush1.bf16.msra.mxu0 0
        %1029 = vmatprep.subr.bf16.mxu0 0
        %1030 = vmatpush1.bf16.msra.mxu0 0
        %1031 = vmatprep.subr.bf16.mxu0 0
        %1032 = vmatpush1.bf16.msra.mxu0 0
        %1033 = vmatprep.subr.bf16.mxu0 0
        %1034 = vmatpush1.bf16.msra.mxu0 0
        %1035 = vmatprep.mubr.bf16.mxu0 0
        %1036 = vmatmul.mubr.bf16.gmra.mrb[0].mxu0 %v490
        %v1037 = vpop.f32.mrb[0].mxu0
        %v1038 = vadd.f32 %v576, %v1037
        %v1039 = vpop.f32.mrb[0].mxu0
        %v1040 = vadd.f32 %v580, %v1039
        %v1041 = vpop.f32.mrb[0].mxu0
        %v1042 = vadd.f32 %v576, %v1041
        %v1043 = vpop.f32.mrb[0].mxu0
        %v1044 = vadd.f32 %v580, %v1043
        %1045 = vdwg.mxu0
        %1046 = vmatprep.subr.bf16.mxu0 %v796
        %1047 = vmatpush1.bf16.msra.mxu0 %v795
        %1048 = vmatprep.subr.bf16.mxu0 %v804
        %1049 = vmatpush1.bf16.msra.mxu0 %v803
        %1050 = vmatprep.subr.bf16.mxu0 %v812
        %1051 = vmatpush1.bf16.msra.mxu0 %v811
        %1052 = vmatprep.subr.bf16.mxu0 %v820
        %1053 = vmatpush1.bf16.msra.mxu0 %v819
        %1054 = vmatprep.subr.bf16.mxu0 %v828
        %1055 = vmatpush1.bf16.msra.mxu0 %v827
        %1056 = vmatprep.subr.bf16.mxu0 %v836
        %1057 = vmatpush1.bf16.msra.mxu0 %v835
        %1058 = vmatprep.subr.bf16.mxu0 %v844
        %1059 = vmatpush1.bf16.msra.mxu0 %v843
        %1060 = vmatprep.subr.bf16.mxu0 %v852
        %1061 = vmatpush1.bf16.msra.mxu0 %v851
        %1062 = vmatprep.subr.bf16.mxu0 0
        %1063 = vmatpush1.bf16.msra.mxu0 0
        %1064 = vmatprep.subr.bf16.mxu0 0
        %1065 = vmatpush1.bf16.msra.mxu0 0
        %1066 = vmatprep.subr.bf16.mxu0 0
        %1067 = vmatpush1.bf16.msra.mxu0 0
        %1068 = vmatprep.subr.bf16.mxu0 0
        %1069 = vmatpush1.bf16.msra.mxu0 0
        %1070 = vmatprep.subr.bf16.mxu0 0
        %1071 = vmatpush1.bf16.msra.mxu0 0
        %1072 = vmatprep.subr.bf16.mxu0 0
        %1073 = vmatpush1.bf16.msra.mxu0 0
        %1074 = vmatprep.subr.bf16.mxu0 0
        %1075 = vmatpush1.bf16.msra.mxu0 0
        %1076 = vmatprep.subr.bf16.mxu0 0
        %1077 = vmatpush1.bf16.msra.mxu0 0
        %1078 = vmatprep.mubr.bf16.mxu0 0
        %1079 = vmatmul.mubr.bf16.gmra.mrb[0].mxu0 %v490
        %v1080 = vpop.f32.mrb[0].mxu0
        %v1081 = vadd.f32 %v584, %v1080
        %v1082 = vpop.f32.mrb[0].mxu0
        %v1083 = vadd.f32 %v588, %v1082
        %v1084 = vpop.f32.mrb[0].mxu0
        %v1085 = vadd.f32 %v584, %v1084
        %v1086 = vpop.f32.mrb[0].mxu0
        %v1087 = vadd.f32 %v588, %v1086
        %1088 = vdwg.mxu0
        %v1089 = vmax.f32 %v952, 0.0
        %v1090 = vmax.f32 %v954, 0.0
        %v1091 = vmax.f32 %v995, 0.0
        %v1092 = vmax.f32 %v997, 0.0
        %v1093 = vmax.f32 %v1038, 0.0
        %v1094 = vmax.f32 %v1040, 0.0
        %v1095 = vmax.f32 %v1081, 0.0
        %v1096 = vmax.f32 %v1083, 0.0
        %v1097 = vmax.f32 %v956, 0.0
        %v1098 = vmax.f32 %v958, 0.0
        %v1099 = vmax.f32 %v999, 0.0
        %v1100 = vmax.f32 %v1001, 0.0
        %v1101 = vmax.f32 %v1042, 0.0
        %v1102 = vmax.f32 %v1044, 0.0
        %v1103 = vmax.f32 %v1085, 0.0
        %v1104 = vmax.f32 %v1087, 0.0
        %s1105 = smul.u32 %s27, 3
        %s1106 = sadd.s32 %s1105, %s28
        %s1107 = smul.u32 %s1106, 16
        %v1108 = vlaneseq
        %v1109 = vshrl.u32 %v1108, 7
        %v1110 = vadd.s32 %v1109, 8
        %v1111 = vstv %s1107
        %v1112 = vadd.s32 %v1111, %v1109
        %v1113 = vadd.s32 %v1111, %v1110
        %vm1114 = vcmp.lt.s32.totalorder %v1112, 81
        %vm1115 = vcmp.lt.s32.totalorder %v1113, 81
        %v1116 = vsel %vm1114, 1, 0
        %v1117 = vsel %vm1115, 1, 0
        %vm1118 = vcmp.eq.s32.totalorder %v1116, 1
        %vm1119 = vcmp.eq.s32.totalorder %v1117, 1
        %v1120 = vsel %vm1118, %v1089, 0.0
        %v1121 = vsel %vm1118, %v1090, 0.0
        %v1122 = vsel %vm1118, %v1091, 0.0
        %v1123 = vsel %vm1118, %v1092, 0.0
        %v1124 = vsel %vm1118, %v1093, 0.0
        %v1125 = vsel %vm1118, %v1094, 0.0
        %v1126 = vsel %vm1118, %v1095, 0.0
        %v1127 = vsel %vm1118, %v1096, 0.0
        %v1128 = vsel %vm1119, %v1097, 0.0
        %v1129 = vsel %vm1119, %v1098, 0.0
        %v1130 = vsel %vm1119, %v1099, 0.0
        %v1131 = vsel %vm1119, %v1100, 0.0
        %v1132 = vsel %vm1119, %v1101, 0.0
        %v1133 = vsel %vm1119, %v1102, 0.0
        %v1134 = vsel %vm1119, %v1103, 0.0
        %v1135 = vsel %vm1119, %v1104, 0.0
        %v1136 = vld [vmem:[#allocation2] sm:$0xff]
        %v1137 = vadd.f32 %v1120, %v1128
        %v1138 = vrot.slane %v1137, 4
        %v1139 = vadd.f32 %v1137, %v1138
        %v1140 = vrot.slane %v1139, 2
        %v1141 = vadd.f32 %v1139, %v1140
        %v1142 = vrot.slane %v1141, 1
        %v1143 = vadd.f32 %v1141, %v1142
        %v1144 = vadd.f32 %v1121, %v1129
        %v1145 = vrot.slane %v1144, 4
        %v1146 = vadd.f32 %v1144, %v1145
        %v1147 = vrot.slane %v1146, 2
        %v1148 = vadd.f32 %v1146, %v1147
        %v1149 = vrot.slane %v1148, 1
        %v1150 = vadd.f32 %v1148, %v1149
        %v1151 = vadd.f32 %v1122, %v1130
        %v1152 = vrot.slane %v1151, 4
        %v1153 = vadd.f32 %v1151, %v1152
        %v1154 = vrot.slane %v1153, 2
        %v1155 = vadd.f32 %v1153, %v1154
        %v1156 = vrot.slane %v1155, 1
        %v1157 = vadd.f32 %v1155, %v1156
        %v1158 = vadd.f32 %v1123, %v1131
        %v1159 = vrot.slane %v1158, 4
        %v1160 = vadd.f32 %v1158, %v1159
        %v1161 = vrot.slane %v1160, 2
        %v1162 = vadd.f32 %v1160, %v1161
        %v1163 = vrot.slane %v1162, 1
        %v1164 = vadd.f32 %v1162, %v1163
        %v1165 = vadd.f32 %v1124, %v1132
        %v1166 = vrot.slane %v1165, 4
        %v1167 = vadd.f32 %v1165, %v1166
        %v1168 = vrot.slane %v1167, 2
        %v1169 = vadd.f32 %v1167, %v1168
        %v1170 = vrot.slane %v1169, 1
        %v1171 = vadd.f32 %v1169, %v1170
        %v1172 = vadd.f32 %v1125, %v1133
        %v1173 = vrot.slane %v1172, 4
        %v1174 = vadd.f32 %v1172, %v1173
        %v1175 = vrot.slane %v1174, 2
        %v1176 = vadd.f32 %v1174, %v1175
        %v1177 = vrot.slane %v1176, 1
        %v1178 = vadd.f32 %v1176, %v1177
        %v1179 = vadd.f32 %v1126, %v1134
        %v1180 = vrot.slane %v1179, 4
        %v1181 = vadd.f32 %v1179, %v1180
        %v1182 = vrot.slane %v1181, 2
        %v1183 = vadd.f32 %v1181, %v1182
        %v1184 = vrot.slane %v1183, 1
        %v1185 = vadd.f32 %v1183, %v1184
        %v1186 = vadd.f32 %v1127, %v1135
        %v1187 = vrot.slane %v1186, 4
        %v1188 = vadd.f32 %v1186, %v1187
        %v1189 = vrot.slane %v1188, 2
        %v1190 = vadd.f32 %v1188, %v1189
        %v1191 = vrot.slane %v1190, 1
        %v1192 = vadd.f32 %v1190, %v1191
        %v1201 = vcombine.low %v1143, %v1150
        %v1202 = vcombine.low %v1157, %v1164
        %v1203 = vcombine.low %v1171, %v1178
        %v1204 = vcombine.low %v1185, %v1192
        %v1206 = vunpack.c.l.s4 1966171168
        %v1207 = vunpack.c.0.s8 %v1206
        %v1208 = vlaneseq
        %v1209 = vshrl.u32 %v1208, 7
        %v1210 = vsub.s32 %v1207, %v1209
        %v1211 = vrot.slane %v1201, %v1210
        %v1213 = vunpack.c.l.s4 1966171168
        %v1214 = vunpack.c.0.s8 %v1213
        %v1215 = vlaneseq
        %v1216 = vshrl.u32 %v1215, 7
        %v1217 = vsub.s32 %v1214, %v1216
        %v1218 = vrot.slane %v1202, %v1217
        %v1220 = vunpack.c.l.s4 1966171168
        %v1221 = vunpack.c.0.s8 %v1220
        %v1222 = vlaneseq
        %v1223 = vshrl.u32 %v1222, 7
        %v1224 = vsub.s32 %v1221, %v1223
        %v1225 = vrot.slane %v1203, %v1224
        %v1227 = vunpack.c.l.s4 1966171168
        %v1228 = vunpack.c.0.s8 %v1227
        %v1229 = vlaneseq
        %v1230 = vshrl.u32 %v1229, 7
        %v1231 = vsub.s32 %v1228, %v1230
        %v1232 = vrot.slane %v1204, %v1231
        %v1233 = vcombine.low %v1211, %v1218
        %v1234 = vcombine.low %v1225, %v1232
        %v1236 = vunpack.c.l.s4 1966171168
        %v1237 = vunpack.c.0.s8 %v1236
        %v1238 = vlaneseq
        %v1239 = vshrl.u32 %v1238, 7
        %v1240 = vsub.s32 %v1237, %v1239
        %v1241 = vrot.slane %v1233, %v1240
        %v1243 = vunpack.c.l.s4 1966171168
        %v1244 = vunpack.c.0.s8 %v1243
        %v1245 = vlaneseq
        %v1246 = vshrl.u32 %v1245, 7
        %v1247 = vsub.s32 %v1244, %v1246
        %v1248 = vrot.slane %v1234, %v1247
        %v1249 = vcombine.low %v1241, %v1248
        %v1251 = vadd.f32 %v1136, %v1249
        %1252 = vst [vmem:[#allocation2] sm:$0xff] %v1251
        %p1253 = scmp.eq.s32.totalorder %s28, 2
        // Predicated region
        $region57: #{tpu_custom_call.1} parent=39 // pred_check
          %p1254 = pneg %p1253
        $region58: #{tpu_custom_call.1} parent=39 // pred_check_branch
          %1256 = sbr.rel (%p1254) target = $region60
        $region59: #{tpu_custom_call.1} parent=39 // pred_region
          %v1257 = vld [vmem:[#allocation2] sm:$0xff]
          %v1258 = vmul.f32 %v1257, 0.012345679
          %v1260 = vlaneseq
          %v1261 = vshrl.u32 %v1260, 7
          %v1262 = vsub.s32 0, %v1261
          %v1263 = vrot.slane %v1258, %v1262
          %v1264 = vlaneseq
          %v1265 = vshrl.u32 %v1264, 7
          %v1266 = vsub.s32 1, %v1265
          %v1267 = vrot.slane %v1258, %v1266
          %v1268 = vlaneseq
          %v1269 = vshrl.u32 %v1268, 7
          %v1270 = vsub.s32 2, %v1269
          %v1271 = vrot.slane %v1258, %v1270
          %v1272 = vlaneseq
          %v1273 = vshrl.u32 %v1272, 7
          %v1274 = vsub.s32 3, %v1273
          %v1275 = vrot.slane %v1258, %v1274
          %v1276 = vlaneseq
          %v1277 = vshrl.u32 %v1276, 7
          %v1278 = vsub.s32 4, %v1277
          %v1279 = vrot.slane %v1258, %v1278
          %v1280 = vlaneseq
          %v1281 = vshrl.u32 %v1280, 7
          %v1282 = vsub.s32 5, %v1281
          %v1283 = vrot.slane %v1258, %v1282
          %v1284 = vlaneseq
          %v1285 = vshrl.u32 %v1284, 7
          %v1286 = vsub.s32 6, %v1285
          %v1287 = vrot.slane %v1258, %v1286
          %v1288 = vlaneseq
          %v1289 = vshrl.u32 %v1288, 7
          %v1290 = vsub.s32 7, %v1289
          %v1291 = vrot.slane %v1258, %v1290
          %1300 = vst [vmem:[%s290] sm:$0xff] %v1263
          %1301 = vst [vmem:[%s290 + $0x8] sm:$0xff] %v1267
          %1302 = vst [vmem:[%s290 + $0x10] sm:$0xff] %v1271
          %1303 = vst [vmem:[%s290 + $0x18] sm:$0xff] %v1275
          %1304 = vst [vmem:[%s290 + $0x20] sm:$0xff] %v1279
          %1305 = vst [vmem:[%s290 + $0x28] sm:$0xff] %v1283
          %1306 = vst [vmem:[%s290 + $0x30] sm:$0xff] %v1287
          %1307 = vst [vmem:[%s290 + $0x38] sm:$0xff] %v1291
        $region60: #{tpu_custom_call.1} parent=39 // pred_fallthru
          _
        %s1308 = sand.u32 %s157, 1
        %s1309 = scalar_lea.sflag [#allocation5], %s1308
        %s1310 = sand.u32 %s157, 1
        %s1311 = smul.addr %s1310, 64
        %s1312 = scalar_lea.vmem [#allocation9], %s1311
        // Predicated region
        $region61: #{tpu_custom_call.1} parent=39 // pred_check
          %p1313 = pneg %p167
        $region62: #{tpu_custom_call.1} parent=39 // pred_check_branch
          %1315 = sbr.rel (%p1313) target = $region64
        $region63: #{tpu_custom_call.1} parent=39 // pred_region
          %s1317 = ssub.s32 1024, 1024
          %1318 = vsyncadd %s1309, %s1317
          %s1319 = smul.addr %s27, 8
          %s1320 = smul.addr %s1319, 128
          %s1321 = scalar_lea.hbm %s5, %s1320
          %s1323 = sshll.u32 %s1312, 4
          %s1324 = int_to_ptr.vmem [resolvable:$true] %s1323
          %1326 = dma.vmem_to_hbm [thread:$0]  %s1324, 1024, %s1321, %s1309
        $region64: #{tpu_custom_call.1} parent=39 // pred_fallthru
          _
      $region40: #{tpu_custom_call.1} parent=5 // pred_fallthru
        _
      %p1327 = scmp.le.s32.totalorder 2, %s18
      // Predicated region
      $region65: #{tpu_custom_call.1} parent=5 // pred_check
        %p1328 = pneg %p1327
      $region66: #{tpu_custom_call.1} parent=5 // pred_check_branch
        %1330 = sbr.rel (%p1328) target = $region68
      $region67: #{tpu_custom_call.1} parent=5 // pred_region
        %s1331 = ssub.s32 %s18, 2
        // Predicated region
        $region69: #{tpu_custom_call.1} parent=67 // pred_check
          %p1332 = pneg %p173
        $region70: #{tpu_custom_call.1} parent=67 // pred_check_branch
          %1334 = sbr.rel (%p1332) target = $region72
        $region71: #{tpu_custom_call.1} parent=67 // pred_region
          %s1335 = sand.u32 %s158, 1
          %s1336 = scalar_lea.sflag [#allocation5], %s1335
          %s1337 = sand.u32 %s158, 1
          %s1338 = smul.addr %s1337, 64
          %s1339 = scalar_lea.vmem [#allocation9], %s1338
          %1340 = dma.done %s1336, 1024
        $region72: #{tpu_custom_call.1} parent=67 // pred_fallthru
          _
      $region68: #{tpu_custom_call.1} parent=5 // pred_fallthru
        _
    $region6: #{tpu_custom_call.1} parent=1 // loop_footer
      %s22 = sadd.s32 1, %s18
    $region7: #{tpu_custom_call.1} parent=1 // loop_footer_branch
      %17 = sbr.rel target = $region3
    $region8: #{tpu_custom_call.1} parent=1 // loop_exit
      _
    %1341 = vsyncpa [#allocation4], 1
    %s1342 = scalar_lea.sflag [#allocation4], 1
    %1343 = vsyncpa %s1342, 1
    %1344 = vsyncpa [#allocation7], 1
    %1345 = vsyncpa [#allocation5], 1
    %s1346 = scalar_lea.sflag [#allocation5], 1
    %1347 = vsyncpa %s1346, 1

</llo_original>
